<compile_context>
chip_gen: v5e
topology: v5e:2x2
jax: 0.10.0
libtpu: 0.0.40
codegen_flags: <defaults>
</compile_context>

<pallas_src>
import functools

import jax
import jax.numpy as jnp
from jax import lax
from jax.experimental import pallas as pl
from jax.experimental.pallas import tpu as pltpu


def _round_up(v, m):
    return (v + m - 1) // m * m


def _cdiv(a, b):
    return (a + b - 1) // b


def _gaussian_kernel_body(xi_ref, xj_ref, hni_ref, hnj_ref, o_ref, *,
                          inv_sigma_sq, tn, rhs_resident):
    # xi_ref : (tm, Dp)   row-block of x (MXU LHS)
    # xj_ref : (tn, Dp)   tiled col-block, OR (Np_cols, Dp) resident copy of x
    # hni_ref: (tm, 1)    0.5 * ||x_i||^2   (precomputed)
    # hnj_ref: (1, tn)    0.5 * ||x_j||^2   (precomputed)
    if rhs_resident:
        j = pl.program_id(1)
        start = pl.multiple_of(j * tn, tn)
        xj = xj_ref[pl.ds(start, tn), :]
    else:
        xj = xj_ref[...]

    # NT-form dot (contract dim 1 of both operands): no materialized transpose,
    # f32 accumulation on the MXU.
    inner = lax.dot_general(
        xi_ref[...], xj,
        dimension_numbers=(((1,), (1,)), ((), ())),
        preferred_element_type=jnp.float32)          # (tm, tn)

    # exp(-(||xi||^2 + ||xj||^2 - 2 xi.xj) / (2 sigma^2))
    #   == exp((xi.xj - 0.5||xi||^2 - 0.5||xj||^2) / sigma^2)
    # (No clamp: PyTorch has the same tiny >1.0 drift on the diagonal from f32
    #  rounding; add jnp.minimum(arg, 0.0) if exact <= 1 semantics are needed.)
    arg = (inner - hni_ref[...] - hnj_ref[...]) * inv_sigma_sq
    o_ref[...] = jnp.exp(arg).astype(o_ref.dtype)


def _vmem_caps():
    """(tile-sizing budget, vmem_limit_bytes) derived from this chip's VMEM."""
    try:
        cap = int(pltpu.get_tpu_info().vmem_capacity_bytes)
    except Exception:
        cap = 64 * 1024 * 1024          # conservative fallback (v7x per-core)
    budget = (cap * 13) // 20           # ~65%: size the working set against this
    vmem_limit = (cap * 3) // 4         # ~75%: tell the compiler it may use it
    return budget, vmem_limit


def gaussian_kernel(x, sigma, *, out_dtype=None, mxu_input_dtype=None):
    """exp(-||x_i - x_j||^2 / (2 sigma^2)) for all pairs of rows of x.

    out_dtype: dtype of the (N, N) result; default = x.dtype (PyTorch match).
      bfloat16 halves the dominant N^2 HBM writeback for large N.
    mxu_input_dtype: optionally cast x (and, consistently, the precomputed
      norms) to e.g. jnp.bfloat16 before the matmul — worthwhile when D is
      large enough that the MXU, not HBM, is the binding unit.
    sigma must be a Python scalar (it is folded into the kernel).
    """
    assert sigma > 0
    N, D = x.shape
    if out_dtype is None:
        out_dtype = x.dtype
    out_bytes = jnp.dtype(out_dtype).itemsize

    # Zero-pad the feature (lane / MXU contraction) axis to a multiple of 128;
    # mathematically a no-op for both the dot products and the norms.
    Dp = _round_up(D, 128)
    if Dp != D:
        x = jnp.pad(x, ((0, 0), (0, Dp - D)))
    if mxu_input_dtype is not None and x.dtype != mxu_input_dtype:
        x = x.astype(mxu_input_dtype)
    x_bytes = jnp.dtype(x.dtype).itemsize

    budget, vmem_limit = _vmem_caps()

    if N <= 256:
        # Small problem: a single full-array tile. (Above 256 we always tile so
        # v7x's second TensorCore gets work and the pipeline can overlap.)
        tm = tn = N
        rhs_resident = False
        n_row_pad = 0
        grid = (1, 1)
        xj_spec = pl.BlockSpec((tn, Dp), lambda i, j: (j, 0))
    else:
        # Tiled path. tm is grown preferentially (the RHS block is the one
        # re-fetched across the inner grid axis); tn stays a multiple of 128
        # for lane-dense output stores; tm is capped so there are at least two
        # row tiles (megacore sharding / pipeline overlap).
        tn = min(512, (N // 128) * 128)
        tm = min(1024, _round_up(_cdiv(N, 2), 8))

        def fits(tm_, tn_, resident_):
            np_cols_ = _cdiv(N, tn_) * tn_
            rhs = 2 * (np_cols_ if resident_ else tn_) * Dp * x_bytes
            lhs = 2 * tm_ * Dp * x_bytes
            out = 2 * tm_ * tn_ * out_bytes
            extra = 2 * (tm_ + tn_) * 4 + (2 << 20)     # norms + compiler slack
            return lhs + rhs + out + extra <= budget

        # If the whole (column-padded) x fits comfortably, keep it resident in
        # VMEM and slice it per tile: input HBM traffic drops to O(N * Dp).
        rhs_resident = fits(tm, tn, True)
        if not rhs_resident:
            while not fits(tm, tn, False):
                if tm > 256:
                    tm = max(256, _round_up(tm // 2, 8))
                elif tn > 128:
                    tn = max(128, (tn // 2) // 128 * 128)
                elif tm > 128:
                    tm = max(128, _round_up(tm // 2, 8))
                else:
                    # TODO(synk): K-tile the feature axis (f32 acc scratch +
                    # pl.when finalize) if Dp ever gets so large that even a
                    # 128x128 tile overflows the raised VMEM limit.
                    break

        grid = (_cdiv(N, tm), _cdiv(N, tn))
        np_cols = grid[1] * tn
        # Pad x rows so every *input* block is in-bounds; the (N, N) output is
        # written directly (ragged boundary tiles are masked by Pallas), so no
        # post-kernel N^2 slice copy is needed.
        n_row_pad = max(grid[0] * tm, np_cols) - N
        if rhs_resident:
            xj_spec = pl.BlockSpec((np_cols, Dp), lambda i, j: (0, 0))
        else:
            xj_spec = pl.BlockSpec((tn, Dp), lambda i, j: (j, 0))

    if n_row_pad:
        x = jnp.pad(x, ((0, n_row_pad), (0, 0)))

    # Half squared row norms, precomputed once (tiny O(N*Dp) pass) in f32 from
    # the same (possibly cast) x the MXU sees, so the inner-minus-norm
    # cancellation stays consistent. Pre-scaled by 0.5 so the body only needs
    # (inner - hn_i - hn_j) * (1/sigma^2).
    xf = x.astype(jnp.float32)
    hn = 0.5 * jnp.sum(xf * xf, axis=1)
    hn_col = hn[:, None]          # (Npad, 1)
    hn_row = hn[None, :]          # (1, Npad)

    kernel = functools.partial(
        _gaussian_kernel_body,
        inv_sigma_sq=1.0 / (float(sigma) ** 2),
        tn=tn, rhs_resident=rhs_resident)

    out = pl.pallas_call(
        kernel,
        out_shape=jax.ShapeDtypeStruct((N, N), out_dtype),
        grid_spec=pltpu.PrefetchScalarGridSpec(
            num_scalar_prefetch=0,
            grid=grid,
            in_specs=[
                pl.BlockSpec((tm, Dp), lambda i, j: (i, 0)),   # row block of x
                xj_spec,                                       # col block / resident x
                pl.BlockSpec((tm, 1), lambda i, j: (i, 0)),    # 0.5*||x_i||^2
                pl.BlockSpec((1, tn), lambda i, j: (0, j)),    # 0.5*||x_j||^2
            ],
            out_specs=pl.BlockSpec((tm, tn), lambda i, j: (i, j)),
        ),
        compiler_params=pltpu.CompilerParams(
            dimension_semantics=("parallel", "parallel"),
            vmem_limit_bytes=int(vmem_limit)),
    )(x, x, hn_col, hn_row)

    return out


def gaussian_kernel_ref(x, sigma):
    inner = x @ x.T
    norm = jnp.diag(inner)
    dist_sq = norm[None, :] + norm[:, None] - 2.0 * inner
    return jnp.exp(-dist_sq / (2.0 * sigma ** 2))


if __name__ == "__main__":
    sigma = 1.5

    # Small shape consistent with the module: x is a batch of feature vectors.
    N, D = 8, 32
    x = jax.random.normal(jax.random.PRNGKey(0), (N, D), dtype=jnp.float32)
    out = jax.block_until_ready(gaussian_kernel(x, sigma))
    ref = gaussian_kernel_ref(x, sigma)
    assert out.shape == (N, N)
    assert jnp.allclose(out, ref, atol=1e-5, rtol=1e-5), (
        f"max abs err = {jnp.max(jnp.abs(out - ref))}")

    # Exercise the tiled / ragged-boundary / resident-RHS path once as well.
    N2, D2 = 300, 72
    x2 = jax.random.normal(jax.random.PRNGKey(1), (N2, D2), dtype=jnp.float32)
    out2 = jax.block_until_ready(gaussian_kernel(x2, sigma))
    ref2 = gaussian_kernel_ref(x2, sigma)
    assert out2.shape == (N2, N2)
    assert jnp.allclose(out2, ref2, atol=1e-4, rtol=1e-3), (
        f"max abs err = {jnp.max(jnp.abs(out2 - ref2))}")

    print("KERNEL_OK")
</pallas_src>

<mosaic_0001>
module attributes {stable_mosaic.version = 11 : i64} {
  func.func @_gaussian_kernel_body(%arg0: i32, %arg1: i32, %arg2: memref<8x128xf32, #tpu.memory_space<vmem>>, %arg3: memref<8x128xf32, #tpu.memory_space<vmem>>, %arg4: memref<8x1xf32, #tpu.memory_space<vmem>>, %arg5: memref<1x8xf32, #tpu.memory_space<vmem>>, %arg6: memref<8x8xf32, #tpu.memory_space<vmem>>) attributes {dimension_semantics = [#tpu.dimension_semantics<parallel>, #tpu.dimension_semantics<parallel>], iteration_bounds = array<i64: 1, 1>, scalar_prefetch = 0 : i64, scratch_operands = 0 : i64, tpu.core_type = #tpu.core_type<tc>, window_params = [{transform_indices = @transform_0, window_bounds = array<i64: 8, 128>}, {transform_indices = @transform_1, window_bounds = array<i64: 8, 128>}, {transform_indices = @transform_2, window_bounds = array<i64: 8, 1>}, {transform_indices = @transform_3, window_bounds = array<i64: 1, 8>}, {transform_indices = @transform_4, window_bounds = array<i64: 8, 8>}]} {
    %c0 = arith.constant 0 : index
    %c0_0 = arith.constant 0 : index
    %0 = vector.load %arg3[%c0, %c0_0] : memref<8x128xf32, #tpu.memory_space<vmem>>, vector<8x128xf32>
    %c0_1 = arith.constant 0 : index
    %c0_2 = arith.constant 0 : index
    %1 = vector.load %arg2[%c0_1, %c0_2] : memref<8x128xf32, #tpu.memory_space<vmem>>, vector<8x128xf32>
    %cst = arith.constant dense<0.000000e+00> : vector<8x8xf32>
    %2 = tpu.matmul %1, %0, %cst {dimension_numbers = #tpu.dot_dimension_numbers<[1], [1], [0], [0], [0, 0, 1, 0], [], []>} : vector<8x128xf32>, vector<8x128xf32>, vector<8x8xf32> -> vector<8x8xf32>
    %c0_3 = arith.constant 0 : index
    %c0_4 = arith.constant 0 : index
    %3 = vector.load %arg4[%c0_3, %c0_4] : memref<8x1xf32, #tpu.memory_space<vmem>>, vector<8x1xf32>
    %4 = vector.broadcast %3 : vector<8x1xf32> to vector<8x8xf32>
    %5 = arith.subf %2, %4 : vector<8x8xf32>
    %c0_5 = arith.constant 0 : index
    %c0_6 = arith.constant 0 : index
    %6 = vector.load %arg5[%c0_5, %c0_6] : memref<1x8xf32, #tpu.memory_space<vmem>>, vector<1x8xf32>
    %7 = vector.broadcast %6 : vector<1x8xf32> to vector<8x8xf32>
    %8 = arith.subf %5, %7 : vector<8x8xf32>
    %cst_7 = arith.constant 0.444444448 : f32
    %9 = vector.broadcast %cst_7 : f32 to vector<8x8xf32>
    %10 = arith.mulf %8, %9 : vector<8x8xf32>
    %11 = math.exp %10 : vector<8x8xf32>
    %c0_8 = arith.constant 0 : index
    %c0_9 = arith.constant 0 : index
    %12 = vector.load %arg6[%c0_8, %c0_9] : memref<8x8xf32, #tpu.memory_space<vmem>>, vector<8x8xf32>
    tpu.vector_store %arg6[%c0_8, %c0_9], %11 {strides = array<i32>} : memref<8x8xf32, #tpu.memory_space<vmem>>, vector<8x8xf32>,
    return
  }
  func.func @transform_0(%arg0: i32, %arg1: i32) -> (i32, i32) {
    %c0_i32 = arith.constant 0 : i32
    %c0_i32_0 = arith.constant 0 : i32
    return %arg0, %c0_i32 : i32, i32
  }
  func.func @transform_1(%arg0: i32, %arg1: i32) -> (i32, i32) {
    %c0_i32 = arith.constant 0 : i32
    %c0_i32_0 = arith.constant 0 : i32
    return %arg1, %c0_i32 : i32, i32
  }
  func.func @transform_2(%arg0: i32, %arg1: i32) -> (i32, i32) {
    %c0_i32 = arith.constant 0 : i32
    %c0_i32_0 = arith.constant 0 : i32
    return %arg0, %c0_i32 : i32, i32
  }
  func.func @transform_3(%arg0: i32, %arg1: i32) -> (i32, i32) {
    %c0_i32 = arith.constant 0 : i32
    %c0_i32_0 = arith.constant 0 : i32
    return %c0_i32, %arg1 : i32, i32
  }
  func.func @transform_4(%arg0: i32, %arg1: i32) -> (i32, i32) {
    %c0_i32 = arith.constant 0 : i32
    return %arg0, %arg1 : i32, i32
  }
}

</mosaic_0001>

<llo_original>
// kernel: tpu_custom_call.1
$region0: #{tpu_custom_call.1}
  #allocation0 [shape = 'u32[]', space=smem, size = 0x4, offset = 0x4, fixed_abs, tag = 'smem constant byte address 0x4 - core index']
  #allocation1 [shape = 'u32[72,128]{1,0:T(1,128)}', space=vmem, size = 0x9000, scoped, tag = 'internal scratch']
  %s0 = inlined_call_operand.vmem [shape: f32[8,128], index: 0, kind: input, shape index: {}]
  %s1 = inlined_call_operand.hbm [shape: f32[8,128], index: 1, kind: input, shape index: {}]
  %s2 = inlined_call_operand.vmem [shape: f32[8,1], index: 2, kind: input, shape index: {}]
  %s3 = inlined_call_operand.vmem [shape: f32[1,8], index: 3, kind: input, shape index: {}]
  %s4 = inlined_call_operand.hbm [shape: f32[8,8], index: 4, kind: output, shape index: {}]
  %s5 = sld [smem:[#allocation0]]
  $region30: #{tpu_custom_call.1} parent=0
    _
  %s7 = ssub.s32 1, %s5
  %s8 = scalar_select 0, %s7, %s5
  $region1: #{tpu_custom_call.1} parent=0
    #allocation2 [shape = 'u8[4096]{0}', space=vmem, size = 0x1000, scoped, tag = 'input window, operand 1, single buffered']
    #allocation3 [shape = 's32[1]{0}', space=sflag, size = 0x4, scoped, tag = 'scoped memory for tpu_custom_call.1']
    #allocation4 [shape = 's32[1]{0}', space=sflag, size = 0x4, scoped, tag = 'scoped memory for tpu_custom_call.1']
    #allocation5 [shape = 'u8[4096]{0}', space=vmem, size = 0x1000, scoped, tag = 'output window, operand 0, single buffered']
    %9 = vsyncpa [#allocation3], 0
    %10 = vsyncpa [#allocation4], 0
    // Predicated region
    $region2: #{tpu_custom_call.1} parent=1 // pred_check
      _
    $region3: #{tpu_custom_call.1} parent=1 // pred_check_branch
      %12 = sbr.rel (0) target = $region5
    $region4: #{tpu_custom_call.1} parent=1 // pred_region
      _
    $region5: #{tpu_custom_call.1} parent=1 // pred_fallthru
      _
    // Predicated region
    $region6: #{tpu_custom_call.1} parent=1 // pred_check
      _
    $region7: #{tpu_custom_call.1} parent=1 // pred_check_branch
      %14 = sbr.rel (0) target = $region9
    $region8: #{tpu_custom_call.1} parent=1 // pred_region
      %16 = vsyncadd [#allocation3], 0
      %s18 = sshll.u32 %s1, 4
      %s19 = int_to_ptr.hbm [resolvable:$true] %s18
      %s20 = sshll.u32 [#allocation2], 4
      %s21 = int_to_ptr.vmem [resolvable:$true] %s20
      %23 = dma.hbm_to_vmem [thread:$0]  %s19, 128, %s21, [#allocation3]
    $region9: #{tpu_custom_call.1} parent=1 // pred_fallthru
      _
    // Predicated region
    $region10: #{tpu_custom_call.1} parent=1 // pred_check
      _
    $region11: #{tpu_custom_call.1} parent=1 // pred_check_branch
      %25 = sbr.rel (0) target = $region13
    $region12: #{tpu_custom_call.1} parent=1 // pred_region
      _
    $region13: #{tpu_custom_call.1} parent=1 // pred_fallthru
      _
    // Predicated region
    $region14: #{tpu_custom_call.1} parent=1 // pred_check
      _
    $region15: #{tpu_custom_call.1} parent=1 // pred_check_branch
      %27 = sbr.rel (0) target = $region17
    $region16: #{tpu_custom_call.1} parent=1 // pred_region
      _
    $region17: #{tpu_custom_call.1} parent=1 // pred_fallthru
      _
    // Predicated region
    $region18: #{tpu_custom_call.1} parent=1 // pred_check
      _
    $region19: #{tpu_custom_call.1} parent=1 // pred_check_branch
      %29 = sbr.rel (0) target = $region21
    $region20: #{tpu_custom_call.1} parent=1 // pred_region
      %31 = dma.done [#allocation3], 128
    $region21: #{tpu_custom_call.1} parent=1 // pred_fallthru
      _
    %v32 = vld [vmem:[#allocation2] sm:$0xff]
    %v33 = vld [vmem:[%s0] sm:$0xff]
    %34 = vmatpush.xpose.msra.mxu0 0.0
    %35 = vmatpush.xpose.msra.mxu0 0.0
    %36 = vmatpush.xpose.msra.mxu0 0.0
    %37 = vmatpush.xpose.msra.mxu0 0.0
    %38 = vmatpush.xpose.msra.mxu0 0.0
    %39 = vmatpush.xpose.msra.mxu0 0.0
    %40 = vmatpush.xpose.msra.mxu0 0.0
    %41 = vmatpush.xpose.msra.mxu0 0.0
    %42 = vmatpush.xpose.msra.mxu0 0.0
    %43 = vmatpush.xpose.msra.mxu0 0.0
    %44 = vmatpush.xpose.msra.mxu0 0.0
    %45 = vmatpush.xpose.msra.mxu0 0.0
    %46 = vmatpush.xpose.msra.mxu0 0.0
    %47 = vmatpush.xpose.msra.mxu0 0.0
    %48 = vmatpush.xpose.msra.mxu0 0.0
    %49 = vmatpush.xpose.msra.mxu0 %v32
    %50 = vmatmul.f32.gmra.mxu0 %v33
    %v51 = vpop.f32.mrf.mxu0
    %v52 = vadd.f32 0.0, %v51
    %53 = vdwg.mxu0
    %v54 = vld [vmem:[%s2] sm:$0xff]
    %56 = vset.pattern.permute.xlu0 0
    %57 = vperm.xlu0 %56, %v54
    %v58 = vpop.permute.xlu0 %57
    %v60 = vsub.f32 %v52, %v58
    %v61 = vld [vmem:[%s3] sm:$0x1]
    %v63 = vperm.slane %v61, 0
    %v65 = vsub.f32 %v60, %v63
    %v66 = vmul.f32 %v65, 0.44444445
    %v67 = vmul.f32 %v66, 1.442695
    %v68 = vpow.pop %v67
    %vm69 = vcmask 64512
    %70 = vst.msk [vmem:[#allocation5] sm:$0xff] %vm69, %v68
    // Predicated region
    $region22: #{tpu_custom_call.1} parent=1 // pred_check
      _
    $region23: #{tpu_custom_call.1} parent=1 // pred_check_branch
      %72 = sbr.rel (0) target = $region25
    $region24: #{tpu_custom_call.1} parent=1 // pred_region
      %74 = vsyncadd [#allocation4], 0
      %s76 = sshll.u32 [#allocation5], 4
      %s77 = int_to_ptr.vmem [resolvable:$true] %s76
      %s78 = sshll.u32 %s4, 4
      %s79 = int_to_ptr.hbm [resolvable:$true] %s78
      %81 = dma.vmem_to_hbm [thread:$0]  %s77, 128, %s79, [#allocation4]
    $region25: #{tpu_custom_call.1} parent=1 // pred_fallthru
      _
    // Predicated region
    $region26: #{tpu_custom_call.1} parent=1 // pred_check
      _
    $region27: #{tpu_custom_call.1} parent=1 // pred_check_branch
      %83 = sbr.rel (0) target = $region29
    $region28: #{tpu_custom_call.1} parent=1 // pred_region
      %85 = dma.done [#allocation4], 128
    $region29: #{tpu_custom_call.1} parent=1 // pred_fallthru
      _
    %86 = vsyncpa [#allocation3], 1
    %87 = vsyncpa [#allocation4], 1

</llo_original>
